<compile_context>
chip_gen: v7x
topology: tpu7x:2x2x1
jax: 0.10.0
libtpu: 0.0.40
codegen_flags: <defaults>
</compile_context>

<pallas_src>
import functools

import jax
import jax.numpy as jnp
from jax.experimental import pallas as pl
from jax.experimental.pallas import tpu as pltpu

H = 128        # hidden width (fixed by the module architecture)
LANES = 128    # TPU lane width: output dim is padded to this


def _round_up(n, m):
    return ((n + m - 1) // m) * m


def predict_nn_kernel(x_ref, w_ref, b_ref, o_ref):
    """Fused 3-layer MLP.  Residual is already folded into b_ref row 2.

    x_ref : (TB, d_in_pad) f32   batch tile
    w_ref : (384, 128)     bf16  rows   0:128 -> W1 (rows >= d_in zero)
                                 rows 128:256 -> W2
                                 rows 256:384 -> W3 (cols >= num_pairs zero)
    b_ref : (3, 128)       f32   row 0 -> b1, row 1 -> b2,
                                 row 2 -> b3 + per-pair mean of batch row 0
    o_ref : (TB, 128)      f32   lane-dense padded output
    """
    d_in_pad = x_ref.shape[-1]
    w1 = w_ref[0:d_in_pad, :]          # (d_in_pad, 128) bf16
    w2 = w_ref[H:2 * H, :]             # (128, 128) bf16
    w3 = w_ref[2 * H:3 * H, :]         # (128, 128) bf16
    b1 = b_ref[0:1, :]                 # (1, 128) f32
    b2 = b_ref[1:2, :]
    b3 = b_ref[2:3, :]                 # includes the residual fold

    x = x_ref[...].astype(jnp.bfloat16)
    h1 = jnp.maximum(
        jnp.dot(x, w1, preferred_element_type=jnp.float32) + b1, 0.0)
    h2 = jnp.maximum(
        jnp.dot(h1.astype(jnp.bfloat16), w2,
                preferred_element_type=jnp.float32) + b2, 0.0)
    o_ref[...] = jnp.dot(h2.astype(jnp.bfloat16), w3,
                         preferred_element_type=jnp.float32) + b3


def pack_weights(w1, w2, w3, num_pairs, hist_len):
    """Stack W1|W2|W3 into one zero-padded (384,128) bf16 blob (done once)."""
    d_in = num_pairs * hist_len
    assert d_in <= LANES and num_pairs <= LANES, "d_in / num_pairs must be <= 128"
    assert w1.shape == (d_in, H) and w2.shape == (H, H) and w3.shape == (H, num_pairs)
    blob = jnp.zeros((3 * H, LANES), jnp.float32)
    blob = blob.at[0:d_in, 0:H].set(w1)
    blob = blob.at[H:2 * H, 0:H].set(w2)
    blob = blob.at[2 * H:3 * H, 0:num_pairs].set(w3)
    return blob.astype(jnp.bfloat16)


def pack_biases(b1, b2):
    """b1 / b2 into a (2,128) f32 block (done once); b3 is folded per call."""
    b = jnp.zeros((2, LANES), jnp.float32)
    b = b.at[0, 0:H].set(b1.reshape(-1))
    b = b.at[1, 0:H].set(b2.reshape(-1))
    return b


@functools.partial(jax.jit, static_argnames=("num_pairs", "hist_len"))
def predict_nn_forward(x, w_blob, b12, b3, *, num_pairs, hist_len):
    B, d_in = x.shape
    assert d_in == num_pairs * hist_len and d_in <= LANES and num_pairs <= LANES

    # ---- residual fold (grid-invariant, computed ONCE here, not per step) ----
    res = x[0].reshape(num_pairs, hist_len).mean(axis=1)            # (num_pairs,)
    bias3 = jnp.zeros((1, LANES), jnp.float32).at[0, :num_pairs].set(
        b3.reshape(-1) + res)
    b_blob = jnp.concatenate([b12, bias3], axis=0)                   # (3,128) f32

    # ---- batch tiling: big tiles, but keep >=2 grid steps when B allows ----
    TB = max(8, min(1024, _round_up(max(B, 1), 16) // 2))
    B_pad = _round_up(B, TB)

    # Feature dim kept at native width (no 128-lane pad copy); only sublane-align.
    d_in_pad = _round_up(d_in, 8)
    if (B_pad, d_in_pad) != (B, d_in):
        x = jnp.pad(x, ((0, B_pad - B), (0, d_in_pad - d_in)))

    grid = (B_pad // TB,)
    flops = 2 * B_pad * (d_in_pad * H + H * H + H * LANES)
    bytes_accessed = (4 * (B_pad * d_in_pad + b_blob.size + B_pad * LANES)
                      + 2 * w_blob.size)

    out = pl.pallas_call(
        predict_nn_kernel,
        out_shape=jax.ShapeDtypeStruct((B_pad, LANES), jnp.float32),
        grid=grid,
        in_specs=[
            pl.BlockSpec((TB, d_in_pad), lambda i: (i, 0)),          # x tile
            # Constant block index -> DMA'd once, resident across grid steps.
            pl.BlockSpec((3 * H, LANES), lambda i: (0, 0)),          # bf16 weights
            pl.BlockSpec((3, LANES), lambda i: (0, 0)),              # f32 biases
        ],
        out_specs=pl.BlockSpec((TB, LANES), lambda i: (i, 0)),       # lane-dense
        compiler_params=pltpu.CompilerParams(
            dimension_semantics=("parallel",)),
        cost_estimate=pl.CostEstimate(
            flops=flops, transcendentals=0, bytes_accessed=bytes_accessed),
    )(x, w_blob, b_blob)
    return out[:B, :num_pairs]


def reference_forward(x, w1, b1, w2, b2, w3, b3, num_pairs, hist_len):
    h1 = jnp.maximum(x @ w1 + b1, 0.0)
    h2 = jnp.maximum(h1 @ w2 + b2, 0.0)
    out = h2 @ w3 + b3
    res = x[0].reshape(num_pairs, hist_len).mean(axis=1)
    return out + res[None, :]


if __name__ == "__main__":
    num_pairs, hist_len = 8, 12
    d_in = num_pairs * hist_len

    key = jax.random.PRNGKey(0)
    kx, kx2, k1, k2, k3, k4, k5, k6 = jax.random.split(key, 8)

    w1 = jax.random.normal(k1, (d_in, H), jnp.float32) * 0.05
    b1 = jax.random.normal(k2, (H,), jnp.float32) * 0.05
    w2 = jax.random.normal(k3, (H, H), jnp.float32) * 0.05
    b2 = jax.random.normal(k4, (H,), jnp.float32) * 0.05
    w3 = jax.random.normal(k5, (H, num_pairs), jnp.float32) * 0.05
    b3 = jax.random.normal(k6, (num_pairs,), jnp.float32) * 0.05

    w_blob = pack_weights(w1, w2, w3, num_pairs, hist_len)
    b12 = pack_biases(b1, b2)

    # Small batch (single grid step) and a larger batch (multi-step grid +
    # batch padding path), both checked against the f32 JAX reference.
    for batch, kk in ((2, kx), (200, kx2)):
        x = jax.random.normal(kk, (batch, d_in), jnp.float32)
        out = predict_nn_forward(x, w_blob, b12, b3,
                                 num_pairs=num_pairs, hist_len=hist_len)
        out = jax.block_until_ready(out)
        ref = reference_forward(x, w1, b1, w2, b2, w3, b3, num_pairs, hist_len)
        assert out.shape == (batch, num_pairs)
        # bf16 matmul operands (f32 accumulation) -> ~1e-2 level tolerance.
        assert jnp.allclose(out, ref, atol=3e-2, rtol=3e-2), \
            f"mismatch vs JAX reference at batch={batch}"

    print("KERNEL_OK")
</pallas_src>

<mosaic_0001>
module attributes {stable_mosaic.version = 11 : i64} {
  func.func @predict_nn_kernel(%arg0: i32, %arg1: memref<8x96xf32, #tpu.memory_space<vmem>>, %arg2: memref<384x128xbf16, #tpu.memory_space<vmem>>, %arg3: memref<3x128xf32, #tpu.memory_space<vmem>>, %arg4: memref<8x128xf32, #tpu.memory_space<vmem>>) attributes {dimension_semantics = [#tpu.dimension_semantics<parallel>], iteration_bounds = array<i64: 1>, scalar_prefetch = 0 : i64, scratch_operands = 0 : i64, tpu.core_type = #tpu.core_type<tc>, window_params = [{transform_indices = @transform_0, window_bounds = array<i64: 8, 96>}, {pipeline_mode = #tpu.pipeline_mode<synchronous>, transform_indices = @transform_1, window_bounds = array<i64: 384, 128>}, {pipeline_mode = #tpu.pipeline_mode<synchronous>, transform_indices = @transform_2, window_bounds = array<i64: 3, 128>}, {transform_indices = @transform_3, window_bounds = array<i64: 8, 128>}]} {
    %c0 = arith.constant 0 : index
    %c0_0 = arith.constant 0 : index
    %0 = vector.load %arg2[%c0, %c0_0] : memref<384x128xbf16, #tpu.memory_space<vmem>>, vector<96x128xbf16>
    %c128 = arith.constant 128 : index
    %c0_1 = arith.constant 0 : index
    %1 = vector.load %arg2[%c128, %c0_1] : memref<384x128xbf16, #tpu.memory_space<vmem>>, vector<128x128xbf16>
    %c256 = arith.constant 256 : index
    %c0_2 = arith.constant 0 : index
    %2 = vector.load %arg2[%c256, %c0_2] : memref<384x128xbf16, #tpu.memory_space<vmem>>, vector<128x128xbf16>
    %c0_3 = arith.constant 0 : index
    %c0_4 = arith.constant 0 : index
    %3 = vector.load %arg3[%c0_3, %c0_4] : memref<3x128xf32, #tpu.memory_space<vmem>>, vector<1x128xf32>
    %c1 = arith.constant 1 : index
    %c0_5 = arith.constant 0 : index
    %4 = vector.load %arg3[%c1, %c0_5] : memref<3x128xf32, #tpu.memory_space<vmem>>, vector<1x128xf32>
    %c2 = arith.constant 2 : index
    %c0_6 = arith.constant 0 : index
    %5 = vector.load %arg3[%c2, %c0_6] : memref<3x128xf32, #tpu.memory_space<vmem>>, vector<1x128xf32>
    %c0_7 = arith.constant 0 : index
    %c0_8 = arith.constant 0 : index
    %6 = vector.load %arg1[%c0_7, %c0_8] : memref<8x96xf32, #tpu.memory_space<vmem>>, vector<8x96xf32>
    %7 = arith.truncf %6 : vector<8x96xf32> to vector<8x96xbf16>
    %cst = arith.constant dense<0.000000e+00> : vector<8x128xf32>
    %8 = tpu.matmul %7, %0, %cst {dimension_numbers = #tpu.dot_dimension_numbers<[1], [0], [0], [1], [0, 0, 1, 1], [], []>} : vector<8x96xbf16>, vector<96x128xbf16>, vector<8x128xf32> -> vector<8x128xf32>
    %9 = vector.broadcast %3 : vector<1x128xf32> to vector<8x128xf32>
    %10 = arith.addf %8, %9 : vector<8x128xf32>
    %cst_9 = arith.constant 0.000000e+00 : f32
    %11 = vector.broadcast %cst_9 : f32 to vector<8x128xf32>
    %12 = arith.maximumf %10, %11 : vector<8x128xf32>
    %13 = arith.truncf %12 : vector<8x128xf32> to vector<8x128xbf16>
    %cst_10 = arith.constant dense<0.000000e+00> : vector<8x128xf32>
    %14 = tpu.matmul %13, %1, %cst_10 {dimension_numbers = #tpu.dot_dimension_numbers<[1], [0], [0], [1], [0, 0, 1, 1], [], []>} : vector<8x128xbf16>, vector<128x128xbf16>, vector<8x128xf32> -> vector<8x128xf32>
    %15 = vector.broadcast %4 : vector<1x128xf32> to vector<8x128xf32>
    %16 = arith.addf %14, %15 : vector<8x128xf32>
    %cst_11 = arith.constant 0.000000e+00 : f32
    %17 = vector.broadcast %cst_11 : f32 to vector<8x128xf32>
    %18 = arith.maximumf %16, %17 : vector<8x128xf32>
    %19 = arith.truncf %18 : vector<8x128xf32> to vector<8x128xbf16>
    %cst_12 = arith.constant dense<0.000000e+00> : vector<8x128xf32>
    %20 = tpu.matmul %19, %2, %cst_12 {dimension_numbers = #tpu.dot_dimension_numbers<[1], [0], [0], [1], [0, 0, 1, 1], [], []>} : vector<8x128xbf16>, vector<128x128xbf16>, vector<8x128xf32> -> vector<8x128xf32>
    %21 = vector.broadcast %5 : vector<1x128xf32> to vector<8x128xf32>
    %22 = arith.addf %20, %21 : vector<8x128xf32>
    %c0_13 = arith.constant 0 : index
    %c0_14 = arith.constant 0 : index
    %23 = vector.load %arg4[%c0_13, %c0_14] : memref<8x128xf32, #tpu.memory_space<vmem>>, vector<8x128xf32>
    tpu.vector_store %arg4[%c0_13, %c0_14], %22 {strides = array<i32>} : memref<8x128xf32, #tpu.memory_space<vmem>>, vector<8x128xf32>,
    return
  }
  func.func @transform_0(%arg0: i32) -> (i32, i32) {
    %c0_i32 = arith.constant 0 : i32
    %c0_i32_0 = arith.constant 0 : i32
    return %arg0, %c0_i32 : i32, i32
  }
  func.func @transform_1(%arg0: i32) -> (i32, i32) {
    %c0_i32 = arith.constant 0 : i32
    %c0_i32_0 = arith.constant 0 : i32
    %c0_i32_1 = arith.constant 0 : i32
    return %c0_i32, %c0_i32_0 : i32, i32
  }
  func.func @transform_2(%arg0: i32) -> (i32, i32) {
    %c0_i32 = arith.constant 0 : i32
    %c0_i32_0 = arith.constant 0 : i32
    %c0_i32_1 = arith.constant 0 : i32
    return %c0_i32, %c0_i32_0 : i32, i32
  }
  func.func @transform_3(%arg0: i32) -> (i32, i32) {
    %c0_i32 = arith.constant 0 : i32
    %c0_i32_0 = arith.constant 0 : i32
    return %arg0, %c0_i32 : i32, i32
  }
}

</mosaic_0001>

<llo_original>
// kernel: squeeze.1
$region0: #{squeeze.1}
  %s0 = inlined_call_operand.vmem [shape: f32[96], index: 0, kind: input, shape index: {}]
  %s1 = inlined_call_operand.vmem [shape: f32[8,12], index: 1, kind: output, shape index: {}]
  $region1: #{squeeze.1} parent=0
    #allocation0 [shape = 'u8[4096]{0}', space=vmem, size = 0x1000, scoped, tag = 'scoped mem for input reshape']
    %s3 = sshllo.u32 0, 1
    %v4 = vld [vmem:[%s0] sm:%s3]
    %5 = vst [vmem:[#allocation0] sm:%s3] %v4
    %v6 = vld [vmem:[#allocation0] sm:$0x1]
    %vm7 = vcmask 97280
    %8 = vst.msk [vmem:[%s1] sm:$0x1] %vm7, %v6
    %v9 = vld [vmem:[#allocation0] sm:$0x1]
    %10 = vrot.lane.b32.xlu0 %v9, 116
    %v11 = vpop.permute.xlu0 %10
    %vm12 = vcmask 97280
    %s13 = scalar_lea.vmem %s1, 1
    %14 = vst.msk [vmem:[%s13] sm:$0x1] %vm12, %v11
    %v15 = vld [vmem:[#allocation0] sm:$0x1]
    %16 = vrot.lane.b32.xlu0 %v15, 104
    %v17 = vpop.permute.xlu0 %16
    %vm18 = vcmask 97280
    %s19 = scalar_lea.vmem %s1, 2
    %20 = vst.msk [vmem:[%s19] sm:$0x1] %vm18, %v17
    %v21 = vld [vmem:[#allocation0] sm:$0x1]
    %22 = vrot.lane.b32.xlu0 %v21, 92
    %v23 = vpop.permute.xlu0 %22
    %vm24 = vcmask 97280
    %s25 = scalar_lea.vmem %s1, 3
    %26 = vst.msk [vmem:[%s25] sm:$0x1] %vm24, %v23
    %v27 = vld [vmem:[#allocation0] sm:$0x1]
    %28 = vrot.lane.b32.xlu0 %v27, 80
    %v29 = vpop.permute.xlu0 %28
    %vm30 = vcmask 97280
    %s31 = scalar_lea.vmem %s1, 4
    %32 = vst.msk [vmem:[%s31] sm:$0x1] %vm30, %v29
    %v33 = vld [vmem:[#allocation0] sm:$0x1]
    %34 = vrot.lane.b32.xlu0 %v33, 68
    %v35 = vpop.permute.xlu0 %34
    %vm36 = vcmask 97280
    %s37 = scalar_lea.vmem %s1, 5
    %38 = vst.msk [vmem:[%s37] sm:$0x1] %vm36, %v35
    %v39 = vld [vmem:[#allocation0] sm:$0x1]
    %40 = vrot.lane.b32.xlu0 %v39, 56
    %v41 = vpop.permute.xlu0 %40
    %vm42 = vcmask 97280
    %s43 = scalar_lea.vmem %s1, 6
    %44 = vst.msk [vmem:[%s43] sm:$0x1] %vm42, %v41
    %v45 = vld [vmem:[#allocation0] sm:$0x1]
    %46 = vrot.lane.b32.xlu0 %v45, 44
    %v47 = vpop.permute.xlu0 %46
    %vm48 = vcmask 97280
    %s49 = scalar_lea.vmem %s1, 7
    %50 = vst.msk [vmem:[%s49] sm:$0x1] %vm48, %v47

// kernel: predict_nn_forward.1
$region0: #{predict_nn_forward.1}
  #allocation0 [shape = 'u32[]', space=smem, size = 0x4, offset = 0x4, fixed_abs, tag = 'smem constant byte address 0x4 - core index']
  #allocation1 [shape = 'u32[144,128]{1,0:T(1,128)}', space=vmem, size = 0x12000, scoped, tag = 'internal scratch']
  %s0 = inlined_call_operand.vmem [shape: f32[8,96], index: 0, kind: input, shape index: {}]
  %s1 = inlined_call_operand.hbm [shape: bf16[384,128], index: 1, kind: input, shape index: {}]
  %s2 = inlined_call_operand.vmem [shape: f32[3,128], index: 2, kind: input, shape index: {}]
  %s3 = inlined_call_operand.vmem [shape: f32[8,128], index: 3, kind: output, shape index: {}]
  %s4 = sld [smem:[#allocation0]]
  $region26: #{predict_nn_forward.1} parent=0
    _
  %s6 = ssub.s32 1, %s4
  %s7 = scalar_select 0, %s6, %s4
  $region1: #{predict_nn_forward.1} parent=0
    #allocation2 [shape = 'u8[98304]{0}', space=vmem, size = 0x18000, scoped, tag = 'input window, operand 1, single buffered']
    #allocation3 [shape = 's32[1]{0}', space=sflag, size = 0x4, scoped, tag = 'scoped memory for predict_nn_forward.1']
    %8 = vsyncpa [#allocation3], 0
    // Predicated region
    $region2: #{predict_nn_forward.1} parent=1 // pred_check
      _
    $region3: #{predict_nn_forward.1} parent=1 // pred_check_branch
      %10 = sbr.rel (0) target = $region5
    $region4: #{predict_nn_forward.1} parent=1 // pred_region
      _
    $region5: #{predict_nn_forward.1} parent=1 // pred_fallthru
      _
    // Predicated region
    $region6: #{predict_nn_forward.1} parent=1 // pred_check
      _
    $region7: #{predict_nn_forward.1} parent=1 // pred_check_branch
      %12 = sbr.rel (0) target = $region9
    $region8: #{predict_nn_forward.1} parent=1 // pred_region
      %s14 = ssub.s32 3072, 3072
      %15 = vsyncadd [#allocation3], %s14
      %s16 = sshll.u32 [#allocation2], 4
      %s17 = int_to_ptr.vmem [resolvable:$true] %s16
      %22 = dma.hbm_to_vmem [thread:$0]  %s1, 3072, %s17, [#allocation3], 64, 64, 4
    $region9: #{predict_nn_forward.1} parent=1 // pred_fallthru
      _
    // Predicated region
    $region10: #{predict_nn_forward.1} parent=1 // pred_check
      _
    $region11: #{predict_nn_forward.1} parent=1 // pred_check_branch
      %24 = sbr.rel (0) target = $region13
    $region12: #{predict_nn_forward.1} parent=1 // pred_region
      _
    $region13: #{predict_nn_forward.1} parent=1 // pred_fallthru
      _
    // Predicated region
    $region14: #{predict_nn_forward.1} parent=1 // pred_check
      _
    $region15: #{predict_nn_forward.1} parent=1 // pred_check_branch
      %26 = sbr.rel (0) target = $region17
    $region16: #{predict_nn_forward.1} parent=1 // pred_region
      %27 = dma.done [#allocation3], 3072
    $region17: #{predict_nn_forward.1} parent=1 // pred_fallthru
      _
    %v29 = vld [vmem:[#allocation2] sm:$0xf]
    %v30 = vld [vmem:[#allocation2 + $0x4] sm:$0xf]
    %v31 = vld [vmem:[#allocation2 + $0x8] sm:$0xf]
    %v32 = vld [vmem:[#allocation2 + $0xc] sm:$0xf]
    %v33 = vld [vmem:[#allocation2 + $0x10] sm:$0xf]
    %v34 = vld [vmem:[#allocation2 + $0x14] sm:$0xf]
    %v35 = vld [vmem:[#allocation2 + $0x18] sm:$0xf]
    %v36 = vld [vmem:[#allocation2 + $0x1c] sm:$0xf]
    %v37 = vld [vmem:[#allocation2 + $0x20] sm:$0xf]
    %v38 = vld [vmem:[#allocation2 + $0x24] sm:$0xf]
    %v39 = vld [vmem:[#allocation2 + $0x28] sm:$0xf]
    %v40 = vld [vmem:[#allocation2 + $0x2c] sm:$0xf]
    %v41 = vld [vmem:[#allocation2 + $0x40] sm:$0xf]
    %v42 = vld [vmem:[#allocation2 + $0x44] sm:$0xf]
    %v43 = vld [vmem:[#allocation2 + $0x48] sm:$0xf]
    %v44 = vld [vmem:[#allocation2 + $0x4c] sm:$0xf]
    %v45 = vld [vmem:[#allocation2 + $0x50] sm:$0xf]
    %v46 = vld [vmem:[#allocation2 + $0x54] sm:$0xf]
    %v47 = vld [vmem:[#allocation2 + $0x58] sm:$0xf]
    %v48 = vld [vmem:[#allocation2 + $0x5c] sm:$0xf]
    %v49 = vld [vmem:[#allocation2 + $0x60] sm:$0xf]
    %v50 = vld [vmem:[#allocation2 + $0x64] sm:$0xf]
    %v51 = vld [vmem:[#allocation2 + $0x68] sm:$0xf]
    %v52 = vld [vmem:[#allocation2 + $0x6c] sm:$0xf]
    %v53 = vld [vmem:[#allocation2 + $0x70] sm:$0xf]
    %v54 = vld [vmem:[#allocation2 + $0x74] sm:$0xf]
    %v55 = vld [vmem:[#allocation2 + $0x78] sm:$0xf]
    %v56 = vld [vmem:[#allocation2 + $0x7c] sm:$0xf]
    %v57 = vld [vmem:[#allocation2 + $0x80] sm:$0xf]
    %v58 = vld [vmem:[#allocation2 + $0x84] sm:$0xf]
    %v59 = vld [vmem:[#allocation2 + $0x88] sm:$0xf]
    %v60 = vld [vmem:[#allocation2 + $0x8c] sm:$0xf]
    %v61 = vld [vmem:[#allocation2 + $0x90] sm:$0xf]
    %v62 = vld [vmem:[#allocation2 + $0x94] sm:$0xf]
    %v63 = vld [vmem:[#allocation2 + $0x98] sm:$0xf]
    %v64 = vld [vmem:[#allocation2 + $0x9c] sm:$0xf]
    %v65 = vld [vmem:[#allocation2 + $0xa0] sm:$0xf]
    %v66 = vld [vmem:[#allocation2 + $0xa4] sm:$0xf]
    %v67 = vld [vmem:[#allocation2 + $0xa8] sm:$0xf]
    %v68 = vld [vmem:[#allocation2 + $0xac] sm:$0xf]
    %v69 = vld [vmem:[#allocation2 + $0xb0] sm:$0xf]
    %v70 = vld [vmem:[#allocation2 + $0xb4] sm:$0xf]
    %v71 = vld [vmem:[#allocation2 + $0xb8] sm:$0xf]
    %v72 = vld [vmem:[#allocation2 + $0xbc] sm:$0xf]
    %v73 = vld [vmem:[%s2] sm:$0x1]
    %v74 = vld [vmem:[%s2 + $0x1] sm:$0x1]
    %v75 = vld [vmem:[%s2 + $0x2] sm:$0x1]
    %v76 = vld [vmem:[%s0] sm:$0xff]
    %v77 = vpack.c.bf16 %v76, %v76
    %v78 = vlaneseq
    %v79 = vshrl.u32 %v78, 7
    %v80 = vsub.s32 0, %v79
    %v81 = vrot.slane %v73, %v80
    %v94 = vunpack.c.l.b16 %v29
    %v95 = vunpack.c.l.b16 %v30
    %v96 = vunpack.c.l.b16 %v31
    %v97 = vunpack.c.l.b16 %v32
    %v98 = vunpack.c.l.b16 %v33
    %v99 = vunpack.c.l.b16 %v34
    %v100 = vunpack.c.l.b16 %v35
    %v101 = vunpack.c.l.b16 %v36
    %v102 = vunpack.c.l.b16 %v37
    %v103 = vunpack.c.l.b16 %v38
    %v104 = vunpack.c.l.b16 %v39
    %v105 = vunpack.c.l.b16 %v40
    %v106 = vpack.c.b16 %v95, %v94
    %v107 = vpack.c.b16 %v97, %v96
    %v108 = vpack.c.b16 %v99, %v98
    %v109 = vpack.c.b16 %v101, %v100
    %v110 = vpack.c.b16 %v103, %v102
    %v111 = vpack.c.b16 %v105, %v104
    %vm118 = vcmask 785408
    %v120 = vsel %vm118, %v77, 0
    %122 = vmatprep.subr.bf16.mxu0 0
    %123 = vmatpush1.bf16.msra.mxu0 %v106
    %124 = vmatprep.subr.bf16.mxu0 0
    %125 = vmatpush1.bf16.msra.mxu0 %v107
    %126 = vmatprep.subr.bf16.mxu0 0
    %127 = vmatpush1.bf16.msra.mxu0 %v108
    %128 = vmatprep.subr.bf16.mxu0 0
    %129 = vmatpush1.bf16.msra.mxu0 %v109
    %130 = vmatprep.subr.bf16.mxu0 0
    %131 = vmatpush1.bf16.msra.mxu0 %v110
    %132 = vmatprep.subr.bf16.mxu0 0
    %133 = vmatpush1.bf16.msra.mxu0 %v111
    %134 = vmatprep.subr.bf16.mxu0 0
    %135 = vmatpush1.bf16.msra.mxu0 0
    %136 = vmatprep.subr.bf16.mxu0 0
    %137 = vmatpush1.bf16.msra.mxu0 0
    %138 = vmatprep.subr.bf16.mxu0 0
    %139 = vmatpush1.bf16.msra.mxu0 0
    %140 = vmatprep.subr.bf16.mxu0 0
    %141 = vmatpush1.bf16.msra.mxu0 0
    %142 = vmatprep.subr.bf16.mxu0 0
    %143 = vmatpush1.bf16.msra.mxu0 0
    %144 = vmatprep.subr.bf16.mxu0 0
    %145 = vmatpush1.bf16.msra.mxu0 0
    %146 = vmatprep.subr.bf16.mxu0 0
    %147 = vmatpush1.bf16.msra.mxu0 0
    %148 = vmatprep.subr.bf16.mxu0 0
    %149 = vmatpush1.bf16.msra.mxu0 0
    %150 = vmatprep.subr.bf16.mxu0 0
    %151 = vmatpush1.bf16.msra.mxu0 0
    %152 = vmatprep.subr.bf16.mxu0 0
    %153 = vmatpush1.bf16.msra.mxu0 0
    %154 = vmatprep.mubr.bf16.mxu0 0
    %155 = vmatmul.mubr.bf16.gmra.mrb[0].mxu0 %v120
    %v156 = vpop.f32.mrb[0].mxu0
    %v157 = vadd.f32 %v81, %v156
    %v158 = vpop.f32.mrb[0].mxu0
    %v159 = vpop.f32.mrb[0].mxu0
    %v160 = vpop.f32.mrb[0].mxu0
    %161 = vdwg.mxu0
    %v162 = vmax.f32 %v157, 0.0
    %v163 = vpack.c.bf16 %v162, %v162
    %v164 = vlaneseq
    %v165 = vshrl.u32 %v164, 7
    %v166 = vsub.s32 0, %v165
    %v167 = vrot.slane %v74, %v166
    %v184 = vunpack.c.l.b16 %v41
    %v185 = vunpack.c.l.b16 %v42
    %v186 = vunpack.c.l.b16 %v43
    %v187 = vunpack.c.l.b16 %v44
    %v188 = vunpack.c.l.b16 %v45
    %v189 = vunpack.c.l.b16 %v46
    %v190 = vunpack.c.l.b16 %v47
    %v191 = vunpack.c.l.b16 %v48
    %v192 = vunpack.c.l.b16 %v49
    %v193 = vunpack.c.l.b16 %v50
    %v194 = vunpack.c.l.b16 %v51
    %v195 = vunpack.c.l.b16 %v52
    %v196 = vunpack.c.l.b16 %v53
    %v197 = vunpack.c.l.b16 %v54
    %v198 = vunpack.c.l.b16 %v55
    %v199 = vunpack.c.l.b16 %v56
    %v200 = vpack.c.b16 %v185, %v184
    %v201 = vpack.c.b16 %v187, %v186
    %v202 = vpack.c.b16 %v189, %v188
    %v203 = vpack.c.b16 %v191, %v190
    %v204 = vpack.c.b16 %v193, %v192
    %v205 = vpack.c.b16 %v195, %v194
    %v206 = vpack.c.b16 %v197, %v196
    %v207 = vpack.c.b16 %v199, %v198
    %216 = vmatprep.subr.bf16.mxu0 0
    %217 = vmatpush1.bf16.msra.mxu0 %v200
    %218 = vmatprep.subr.bf16.mxu0 0
    %219 = vmatpush1.bf16.msra.mxu0 %v201
    %220 = vmatprep.subr.bf16.mxu0 0
    %221 = vmatpush1.bf16.msra.mxu0 %v202
    %222 = vmatprep.subr.bf16.mxu0 0
    %223 = vmatpush1.bf16.msra.mxu0 %v203
    %224 = vmatprep.subr.bf16.mxu0 0
    %225 = vmatpush1.bf16.msra.mxu0 %v204
    %226 = vmatprep.subr.bf16.mxu0 0
    %227 = vmatpush1.bf16.msra.mxu0 %v205
    %228 = vmatprep.subr.bf16.mxu0 0
    %229 = vmatpush1.bf16.msra.mxu0 %v206
    %230 = vmatprep.subr.bf16.mxu0 0
    %231 = vmatpush1.bf16.msra.mxu0 %v207
    %232 = vmatprep.subr.bf16.mxu0 0
    %233 = vmatpush1.bf16.msra.mxu0 0
    %234 = vmatprep.subr.bf16.mxu0 0
    %235 = vmatpush1.bf16.msra.mxu0 0
    %236 = vmatprep.subr.bf16.mxu0 0
    %237 = vmatpush1.bf16.msra.mxu0 0
    %238 = vmatprep.subr.bf16.mxu0 0
    %239 = vmatpush1.bf16.msra.mxu0 0
    %240 = vmatprep.subr.bf16.mxu0 0
    %241 = vmatpush1.bf16.msra.mxu0 0
    %242 = vmatprep.subr.bf16.mxu0 0
    %243 = vmatpush1.bf16.msra.mxu0 0
    %244 = vmatprep.subr.bf16.mxu0 0
    %245 = vmatpush1.bf16.msra.mxu0 0
    %246 = vmatprep.subr.bf16.mxu0 0
    %247 = vmatpush1.bf16.msra.mxu0 0
    %248 = vmatprep.mubr.bf16.mxu0 0
    %249 = vmatmul.mubr.bf16.gmra.mrb[0].mxu0 %v163
    %v250 = vpop.f32.mrb[0].mxu0
    %v251 = vadd.f32 %v167, %v250
    %v252 = vpop.f32.mrb[0].mxu0
    %v253 = vpop.f32.mrb[0].mxu0
    %v254 = vpop.f32.mrb[0].mxu0
    %255 = vdwg.mxu0
    %v256 = vmax.f32 %v251, 0.0
    %v257 = vpack.c.bf16 %v256, %v256
    %v258 = vlaneseq
    %v259 = vshrl.u32 %v258, 7
    %v260 = vsub.s32 0, %v259
    %v261 = vrot.slane %v75, %v260
    %v278 = vunpack.c.l.b16 %v57
    %v279 = vunpack.c.l.b16 %v58
    %v280 = vunpack.c.l.b16 %v59
    %v281 = vunpack.c.l.b16 %v60
    %v282 = vunpack.c.l.b16 %v61
    %v283 = vunpack.c.l.b16 %v62
    %v284 = vunpack.c.l.b16 %v63
    %v285 = vunpack.c.l.b16 %v64
    %v286 = vunpack.c.l.b16 %v65
    %v287 = vunpack.c.l.b16 %v66
    %v288 = vunpack.c.l.b16 %v67
    %v289 = vunpack.c.l.b16 %v68
    %v290 = vunpack.c.l.b16 %v69
    %v291 = vunpack.c.l.b16 %v70
    %v292 = vunpack.c.l.b16 %v71
    %v293 = vunpack.c.l.b16 %v72
    %v294 = vpack.c.b16 %v279, %v278
    %v295 = vpack.c.b16 %v281, %v280
    %v296 = vpack.c.b16 %v283, %v282
    %v297 = vpack.c.b16 %v285, %v284
    %v298 = vpack.c.b16 %v287, %v286
    %v299 = vpack.c.b16 %v289, %v288
    %v300 = vpack.c.b16 %v291, %v290
    %v301 = vpack.c.b16 %v293, %v292
    %310 = vmatprep.subr.bf16.mxu0 0
    %311 = vmatpush1.bf16.msra.mxu0 %v294
    %312 = vmatprep.subr.bf16.mxu0 0
    %313 = vmatpush1.bf16.msra.mxu0 %v295
    %314 = vmatprep.subr.bf16.mxu0 0
    %315 = vmatpush1.bf16.msra.mxu0 %v296
    %316 = vmatprep.subr.bf16.mxu0 0
    %317 = vmatpush1.bf16.msra.mxu0 %v297
    %318 = vmatprep.subr.bf16.mxu0 0
    %319 = vmatpush1.bf16.msra.mxu0 %v298
    %320 = vmatprep.subr.bf16.mxu0 0
    %321 = vmatpush1.bf16.msra.mxu0 %v299
    %322 = vmatprep.subr.bf16.mxu0 0
    %323 = vmatpush1.bf16.msra.mxu0 %v300
    %324 = vmatprep.subr.bf16.mxu0 0
    %325 = vmatpush1.bf16.msra.mxu0 %v301
    %326 = vmatprep.subr.bf16.mxu0 0
    %327 = vmatpush1.bf16.msra.mxu0 0
    %328 = vmatprep.subr.bf16.mxu0 0
    %329 = vmatpush1.bf16.msra.mxu0 0
    %330 = vmatprep.subr.bf16.mxu0 0
    %331 = vmatpush1.bf16.msra.mxu0 0
    %332 = vmatprep.subr.bf16.mxu0 0
    %333 = vmatpush1.bf16.msra.mxu0 0
    %334 = vmatprep.subr.bf16.mxu0 0
    %335 = vmatpush1.bf16.msra.mxu0 0
    %336 = vmatprep.subr.bf16.mxu0 0
    %337 = vmatpush1.bf16.msra.mxu0 0
    %338 = vmatprep.subr.bf16.mxu0 0
    %339 = vmatpush1.bf16.msra.mxu0 0
    %340 = vmatprep.subr.bf16.mxu0 0
    %341 = vmatpush1.bf16.msra.mxu0 0
    %342 = vmatprep.mubr.bf16.mxu0 0
    %343 = vmatmul.mubr.bf16.gmra.mrb[0].mxu0 %v257
    %v344 = vpop.f32.mrb[0].mxu0
    %v345 = vadd.f32 %v261, %v344
    %v346 = vpop.f32.mrb[0].mxu0
    %v347 = vpop.f32.mrb[0].mxu0
    %v348 = vpop.f32.mrb[0].mxu0
    %349 = vdwg.mxu0
    %350 = vst [vmem:[%s3] sm:$0xff] %v345
    // Predicated region
    $region18: #{predict_nn_forward.1} parent=1 // pred_check
      _
    $region19: #{predict_nn_forward.1} parent=1 // pred_check_branch
      %352 = sbr.rel (0) target = $region21
    $region20: #{predict_nn_forward.1} parent=1 // pred_region
      _
    $region21: #{predict_nn_forward.1} parent=1 // pred_fallthru
      _
    // Predicated region
    $region22: #{predict_nn_forward.1} parent=1 // pred_check
      _
    $region23: #{predict_nn_forward.1} parent=1 // pred_check_branch
      %354 = sbr.rel (0) target = $region25
    $region24: #{predict_nn_forward.1} parent=1 // pred_region
      _
    $region25: #{predict_nn_forward.1} parent=1 // pred_fallthru
      _
    %355 = vsyncpa [#allocation3], 1

</llo_original>
